<compile_context>
chip_gen: v7x
topology: tpu7x:2x2x1
jax: 0.10.0
libtpu: 0.0.40
codegen_flags: <defaults>
</compile_context>

<pallas_src>
import jax
import jax.numpy as jnp
from jax.experimental import pallas as pl
from jax.experimental.pallas import tpu as pltpu


_ALIGN = 16  # sublane alignment covering f32 (8,128) and bf16 (16,128) tiling


def _round_up(n, m):
    return (n + m - 1) // m * m


def _choose_tiling(batch, tile_b_cap):
    """Pick (tile_b, num_tiles): big tiles, a single step for small batches,
    and an even tile count (v7x megacore) when multiple tiles are needed."""
    tile_b = min(_round_up(tile_b_cap, _ALIGN), _round_up(batch, _ALIGN))
    num_tiles = -(-batch // tile_b)
    if num_tiles > 1 and num_tiles % 2 == 1:
        num_tiles += 1                                  # keep both v7x TCs busy
        tile_b = _round_up(-(-batch // num_tiles), _ALIGN)
    return tile_b, num_tiles


def decoder_classif_kernel(xs_ref, w_ref, b1f_ref, w2_ref, b2_ref, out_ref):
    # Single fused MXU pass: [TILE_B, I+S] @ [I+S, H] with f32 accumulation.
    h = jnp.dot(xs_ref[...], w_ref[...], preferred_element_type=jnp.float32)
    h = jnp.maximum(h + b1f_ref[...], 0.0)              # f32 bias + ReLU epilogue

    # hidden -> 1 projection, emitted lane-dense ([*, TILE_B]) via a trans-B
    # contraction (H with H); w2 occupies row 0 of an 8-row operand so the
    # MXU result keeps a well-formed sublane shape.
    prod = jax.lax.dot_general(
        w2_ref[...], h, (((1,), (1,)), ((), ())),
        preferred_element_type=jnp.float32)              # [8, TILE_B]
    logit = prod[0:1, :] + b2_ref[0]                     # [1, TILE_B]
    out_ref[...] = jax.nn.sigmoid(logit).astype(out_ref.dtype)


def prepare_params(params, *, matmul_dtype=jnp.bfloat16):
    """One-time weight preparation (hoisted out of the forward path).

    Folds the encoder Linear into the first network Linear (no nonlinearity
    between them) and fuses the x / stock_price weight blocks:
        W_fused = concat([W_enc @ W1[:E], W1[E:]], axis=0)   # [I+S, H]
        b_fused = b_enc @ W1[:E] + b1
    """
    w_enc, b_enc = params["w_enc"], params["b_enc"]
    w1, b1 = params["w1"], params["b1"]
    w2, b2 = params["w2"], params["b2"]
    E = w_enc.shape[1]
    H = w1.shape[1]
    w1_enc, w1_stock = w1[:E, :], w1[E:, :]

    hp = jax.lax.Precision.HIGHEST
    wx = jnp.dot(w_enc, w1_enc, precision=hp)                            # [I, H]
    b1f = jnp.dot(b_enc[None, :], w1_enc, precision=hp) + b1[None, :]    # [1, H]
    w_fused = jnp.concatenate([wx, w1_stock], axis=0)                    # [I+S, H]

    w2_pad = jnp.zeros((8, H), jnp.float32).at[0, :].set(
        w2.reshape(-1).astype(jnp.float32))

    return {
        "w_fused": w_fused.astype(matmul_dtype),   # streamed-matmul operand
        "b1f": b1f.astype(jnp.float32),            # f32 epilogue bias
        "w2_pad": w2_pad,                          # row 0 = w2, rows 1..7 zero
        "b2": b2.reshape(1).astype(jnp.float32),   # SMEM scalar
    }


def decoder_classif_forward(x, stock_price, prep, *, tile_b_cap=4096):
    """x: [B, input_size], stock_price: [B, stock_data_size] -> [B, 1] f32."""
    B = x.shape[0]
    IS, H = prep["w_fused"].shape
    mat_dtype = prep["w_fused"].dtype

    tile_b, num_tiles = _choose_tiling(B, tile_b_cap)
    B_pad = tile_b * num_tiles

    # One fused XLA op: concat + cast (+ pad).  In a real pipeline the
    # producer would emit this [B, I+S] low-precision slab directly.
    xs = jnp.concatenate([x, stock_price], axis=1).astype(mat_dtype)
    if B_pad != B:
        xs = jnp.pad(xs, ((0, B_pad - B), (0, 0)))

    const2d = lambda a: pl.BlockSpec(a.shape, lambda i: (0, 0))  # VMEM-resident

    out = pl.pallas_call(
        decoder_classif_kernel,
        out_shape=jax.ShapeDtypeStruct((num_tiles, 1, tile_b), jnp.float32),
        grid=(num_tiles,),
        in_specs=[
            pl.BlockSpec((tile_b, IS), lambda i: (i, 0)),        # streamed
            const2d(prep["w_fused"]),
            const2d(prep["b1f"]),
            const2d(prep["w2_pad"]),
            pl.BlockSpec(memory_space=pltpu.MemorySpace.SMEM),   # b2 scalar
        ],
        # Lane-dense output block (1, tile_b) -> unmasked vector stores.
        out_specs=pl.BlockSpec((None, 1, tile_b), lambda i: (i, 0, 0)),
        compiler_params=pltpu.CompilerParams(
            dimension_semantics=("parallel",),
            vmem_limit_bytes=32 * 1024 * 1024),
    )(xs, prep["w_fused"], prep["b1f"], prep["w2_pad"], prep["b2"])

    return out.reshape(-1)[:B].reshape(B, 1)


def init_params(key, stock_data_size, input_size, encoded_size, hidden_size):
    """weights ~ U(-1,1) (module's init_weights); biases ~ default nn.Linear
    U(-1/sqrt(fan_in), +).  Weights stored [in, out]."""
    k = jax.random.split(key, 6)
    merged = encoded_size + stock_data_size
    u = lambda kk, shape, lim: jax.random.uniform(kk, shape, jnp.float32, -lim, lim)
    return {
        "w_enc": u(k[0], (input_size, encoded_size), 1.0),
        "b_enc": u(k[1], (encoded_size,), 1.0 / (input_size ** 0.5)),
        "w1":    u(k[2], (merged, hidden_size), 1.0),
        "b1":    u(k[3], (hidden_size,), 1.0 / (merged ** 0.5)),
        "w2":    u(k[4], (hidden_size, 1), 1.0),
        "b2":    u(k[5], (1,), 1.0 / (hidden_size ** 0.5)),
    }


def _reference_module(x, stock_price, params):
    """Pure-JAX reference with the ORIGINAL (unfused) module structure, f32."""
    hp = jax.lax.Precision.HIGHEST
    enc = jnp.dot(x, params["w_enc"], precision=hp) + params["b_enc"]
    merged = jnp.concatenate([enc, stock_price], axis=1)
    h = jnp.maximum(jnp.dot(merged, params["w1"], precision=hp) + params["b1"], 0.0)
    return jax.nn.sigmoid(jnp.dot(h, params["w2"], precision=hp) + params["b2"])


def _reference_prepared(x, stock_price, prep):
    """Reference using the SAME prepared/cast operands as the kernel, so the
    comparison tolerance covers only accumulation-order differences."""
    hp = jax.lax.Precision.HIGHEST
    xs = jnp.concatenate([x, stock_price], axis=1).astype(prep["w_fused"].dtype)
    h = jnp.maximum(
        jnp.dot(xs, prep["w_fused"], preferred_element_type=jnp.float32)
        + prep["b1f"], 0.0)
    return jax.nn.sigmoid(
        jnp.dot(h, prep["w2_pad"][0:1, :].T, precision=hp) + prep["b2"])


if __name__ == "__main__":
    stock_data_size = 4
    input_size = 32
    encoded_size = 16
    hidden_size = 32

    key = jax.random.PRNGKey(0)
    kx, ks, kp, kx2, ks2 = jax.random.split(key, 5)
    params = init_params(kp, stock_data_size, input_size, encoded_size, hidden_size)

    # --- small batch: single-grid-step fast path ---------------------------
    B = 8
    x = jax.random.normal(kx, (B, input_size), jnp.float32)
    stock = jax.random.normal(ks, (B, stock_data_size), jnp.float32)
    ref = _reference_module(x, stock, params)

    prep_f32 = prepare_params(params, matmul_dtype=jnp.float32)
    p32 = jax.block_until_ready(decoder_classif_forward(x, stock, prep_f32))
    assert p32.shape == (B, 1)
    assert jnp.allclose(p32, ref, atol=5e-4, rtol=1e-3), \
        float(jnp.max(jnp.abs(p32 - ref)))

    prep_bf16 = prepare_params(params)            # bf16 streaming-input default
    p_bf = jax.block_until_ready(decoder_classif_forward(x, stock, prep_bf16))
    ref_bf = _reference_prepared(x, stock, prep_bf16)
    assert jnp.max(jnp.abs(p_bf - ref_bf)) < 2e-3, \
        float(jnp.max(jnp.abs(p_bf - ref_bf)))

    # --- larger batch: multi-tile grid, even tile count, padded tail -------
    B2 = 1000
    x2 = jax.random.normal(kx2, (B2, input_size), jnp.float32)
    stock2 = jax.random.normal(ks2, (B2, stock_data_size), jnp.float32)
    ref2 = _reference_module(x2, stock2, params)

    p2_32 = jax.block_until_ready(
        decoder_classif_forward(x2, stock2, prep_f32, tile_b_cap=144))
    assert p2_32.shape == (B2, 1)
    assert jnp.allclose(p2_32, ref2, atol=5e-4, rtol=1e-3), \
        float(jnp.max(jnp.abs(p2_32 - ref2)))

    p2_bf = jax.block_until_ready(
        decoder_classif_forward(x2, stock2, prep_bf16, tile_b_cap=144))
    ref2_bf = _reference_prepared(x2, stock2, prep_bf16)
    assert jnp.max(jnp.abs(p2_bf - ref2_bf)) < 2e-3, \
        float(jnp.max(jnp.abs(p2_bf - ref2_bf)))

    print("KERNEL_OK")
</pallas_src>

<mosaic_0001>
module attributes {stable_mosaic.version = 11 : i64} {
  func.func @decoder_classif_kernel(%arg0: i32, %arg1: memref<16x36xf32, #tpu.memory_space<vmem>>, %arg2: memref<36x32xf32, #tpu.memory_space<vmem>>, %arg3: memref<1x32xf32, #tpu.memory_space<vmem>>, %arg4: memref<8x32xf32, #tpu.memory_space<vmem>>, %arg5: memref<1xf32, #tpu.memory_space<smem>>, %arg6: memref<1x1x16xf32, #tpu.memory_space<vmem>>) attributes {dimension_semantics = [#tpu.dimension_semantics<parallel>], iteration_bounds = array<i64: 1>, scalar_prefetch = 0 : i64, scratch_operands = 0 : i64, tpu.core_type = #tpu.core_type<tc>, window_params = [{transform_indices = @transform_0, window_bounds = array<i64: 16, 36>}, {pipeline_mode = #tpu.pipeline_mode<synchronous>, transform_indices = @transform_1, window_bounds = array<i64: 36, 32>}, {pipeline_mode = #tpu.pipeline_mode<synchronous>, transform_indices = @transform_2, window_bounds = array<i64: 1, 32>}, {pipeline_mode = #tpu.pipeline_mode<synchronous>, transform_indices = @transform_3, window_bounds = array<i64: 8, 32>}, {transform_indices = @transform_4, window_bounds = array<i64: 1>}, {transform_indices = @transform_5, window_bounds = array<i64: 1, 1, 16>}]} {
    %c0 = arith.constant 0 : index
    %c0_0 = arith.constant 0 : index
    %0 = vector.load %arg1[%c0, %c0_0] : memref<16x36xf32, #tpu.memory_space<vmem>>, vector<16x36xf32>
    %c0_1 = arith.constant 0 : index
    %c0_2 = arith.constant 0 : index
    %1 = vector.load %arg2[%c0_1, %c0_2] : memref<36x32xf32, #tpu.memory_space<vmem>>, vector<36x32xf32>
    %cst = arith.constant dense<0.000000e+00> : vector<16x32xf32>
    %2 = tpu.matmul %0, %1, %cst {dimension_numbers = #tpu.dot_dimension_numbers<[1], [0], [0], [1], [0, 0, 1, 1], [], []>} : vector<16x36xf32>, vector<36x32xf32>, vector<16x32xf32> -> vector<16x32xf32>
    %c0_3 = arith.constant 0 : index
    %c0_4 = arith.constant 0 : index
    %3 = vector.load %arg3[%c0_3, %c0_4] : memref<1x32xf32, #tpu.memory_space<vmem>>, vector<1x32xf32>
    %4 = vector.broadcast %3 : vector<1x32xf32> to vector<16x32xf32>
    %5 = arith.addf %2, %4 : vector<16x32xf32>
    %cst_5 = arith.constant 0.000000e+00 : f32
    %6 = vector.broadcast %cst_5 : f32 to vector<16x32xf32>
    %7 = arith.maximumf %5, %6 : vector<16x32xf32>
    %c0_6 = arith.constant 0 : index
    %c0_7 = arith.constant 0 : index
    %8 = vector.load %arg4[%c0_6, %c0_7] : memref<8x32xf32, #tpu.memory_space<vmem>>, vector<8x32xf32>
    %cst_8 = arith.constant dense<0.000000e+00> : vector<8x16xf32>
    %9 = tpu.matmul %8, %7, %cst_8 {dimension_numbers = #tpu.dot_dimension_numbers<[1], [1], [0], [0], [0, 0, 1, 0], [], []>} : vector<8x32xf32>, vector<16x32xf32>, vector<8x16xf32> -> vector<8x16xf32>
    %10 = vector.extract_strided_slice %9 {offsets = [0, 0], sizes = [1, 16], strides = [1, 1]} : vector<8x16xf32> to vector<1x16xf32>
    %c0_9 = arith.constant 0 : index
    %11 = memref.load %arg5[%c0_9] : memref<1xf32, #tpu.memory_space<smem>>
    %12 = vector.broadcast %11 : f32 to vector<1x16xf32>
    %13 = arith.addf %10, %12 : vector<1x16xf32>
    %14 = arith.negf %13 : vector<1x16xf32>
    %15 = math.exp %14 : vector<1x16xf32>
    %cst_10 = arith.constant 1.000000e+00 : f32
    %16 = vector.broadcast %cst_10 : f32 to vector<1x16xf32>
    %17 = arith.addf %16, %15 : vector<1x16xf32>
    %18 = arith.divf %16, %17 : vector<1x16xf32>
    %c0_11 = arith.constant 0 : index
    %c0_12 = arith.constant 0 : index
    %c0_13 = arith.constant 0 : index
    %19 = vector.load %arg6[%c0_11, %c0_12, %c0_13] : memref<1x1x16xf32, #tpu.memory_space<vmem>>, vector<1x1x16xf32>
    %20 = vector.shape_cast %19 : vector<1x1x16xf32> to vector<1x16xf32>
    %21 = vector.shape_cast %18 : vector<1x16xf32> to vector<1x1x16xf32>
    tpu.vector_store %arg6[%c0_11, %c0_12, %c0_13], %21 {strides = array<i32>} : memref<1x1x16xf32, #tpu.memory_space<vmem>>, vector<1x1x16xf32>,
    return
  }
  func.func @transform_0(%arg0: i32) -> (i32, i32) {
    %c0_i32 = arith.constant 0 : i32
    %c0_i32_0 = arith.constant 0 : i32
    return %arg0, %c0_i32 : i32, i32
  }
  func.func @transform_1(%arg0: i32) -> (i32, i32) {
    %c0_i32 = arith.constant 0 : i32
    %c0_i32_0 = arith.constant 0 : i32
    %c0_i32_1 = arith.constant 0 : i32
    return %c0_i32, %c0_i32_0 : i32, i32
  }
  func.func @transform_2(%arg0: i32) -> (i32, i32) {
    %c0_i32 = arith.constant 0 : i32
    %c0_i32_0 = arith.constant 0 : i32
    %c0_i32_1 = arith.constant 0 : i32
    return %c0_i32, %c0_i32_0 : i32, i32
  }
  func.func @transform_3(%arg0: i32) -> (i32, i32) {
    %c0_i32 = arith.constant 0 : i32
    %c0_i32_0 = arith.constant 0 : i32
    %c0_i32_1 = arith.constant 0 : i32
    return %c0_i32, %c0_i32_0 : i32, i32
  }
  func.func @transform_4(%arg0: i32) -> i32 {
    %c0_i32 = arith.constant 0 : i32
    %c0_i32_0 = arith.constant 0 : i32
    return %c0_i32 : i32
  }
  func.func @transform_5(%arg0: i32) -> (i32, i32, i32) {
    %c0_i32 = arith.constant 0 : i32
    %c0_i32_0 = arith.constant 0 : i32
    %c0_i32_1 = arith.constant 0 : i32
    return %arg0, %c0_i32, %c0_i32_0 : i32, i32, i32
  }
}

</mosaic_0001>

<llo_original>
// kernel: tpu_custom_call.1
$region0: #{tpu_custom_call.1}
  #allocation0 [shape = 'u32[]', space=smem, size = 0x4, offset = 0x4, fixed_abs, tag = 'smem constant byte address 0x4 - core index']
  #allocation1 [shape = 'u32[144,128]{1,0:T(1,128)}', space=vmem, size = 0x12000, scoped, tag = 'internal scratch']
  #allocation2 [shape = 'f32[1]{0:T(128)S(6)}', space=smem, size = 0x200, scoped, tag = 'scoped memory for tpu_custom_call.1']
  %s0 = inlined_call_operand.vmem [shape: f32[16,36], index: 0, kind: input, shape index: {}]
  %s1 = inlined_call_operand.vmem [shape: f32[36,32], index: 1, kind: input, shape index: {}]
  %s2 = inlined_call_operand.vmem [shape: f32[1,32], index: 2, kind: input, shape index: {}]
  %s3 = inlined_call_operand.vmem [shape: f32[8,32], index: 3, kind: input, shape index: {}]
  %s4 = inlined_call_operand.<no memory space> [shape: f32[1], index: 4, kind: input, shape index: {}]
  %s5 = inlined_call_operand.hbm [shape: f32[1,1,16], index: 5, kind: output, shape index: {}]
  %s6 = sld [smem:[#allocation0]]
  $region30: #{tpu_custom_call.1} parent=0
    _
  %s8 = ssub.s32 1, %s6
  %s9 = scalar_select 0, %s8, %s6
  %10 = sst [smem:[#allocation2]] %s4
  $region1: #{tpu_custom_call.1} parent=0
    #allocation3 [shape = 'u8[512]{0}', space=vmem, size = 0x400, scoped, tag = 'output window, operand 0, single buffered']
    #allocation4 [shape = 's32[1]{0}', space=sflag, size = 0x4, scoped, tag = 'scoped memory for tpu_custom_call.1']
    %11 = vsyncpa [#allocation4], 0
    // Predicated region
    $region2: #{tpu_custom_call.1} parent=1 // pred_check
      _
    $region3: #{tpu_custom_call.1} parent=1 // pred_check_branch
      %13 = sbr.rel (0) target = $region5
    $region4: #{tpu_custom_call.1} parent=1 // pred_region
      _
    $region5: #{tpu_custom_call.1} parent=1 // pred_fallthru
      _
    // Predicated region
    $region6: #{tpu_custom_call.1} parent=1 // pred_check
      _
    $region7: #{tpu_custom_call.1} parent=1 // pred_check_branch
      %15 = sbr.rel (0) target = $region9
    $region8: #{tpu_custom_call.1} parent=1 // pred_region
      _
    $region9: #{tpu_custom_call.1} parent=1 // pred_fallthru
      _
    // Predicated region
    $region10: #{tpu_custom_call.1} parent=1 // pred_check
      _
    $region11: #{tpu_custom_call.1} parent=1 // pred_check_branch
      %17 = sbr.rel (0) target = $region13
    $region12: #{tpu_custom_call.1} parent=1 // pred_region
      _
    $region13: #{tpu_custom_call.1} parent=1 // pred_fallthru
      _
    // Predicated region
    $region14: #{tpu_custom_call.1} parent=1 // pred_check
      _
    $region15: #{tpu_custom_call.1} parent=1 // pred_check_branch
      %19 = sbr.rel (0) target = $region17
    $region16: #{tpu_custom_call.1} parent=1 // pred_region
      _
    $region17: #{tpu_custom_call.1} parent=1 // pred_fallthru
      _
    // Predicated region
    $region18: #{tpu_custom_call.1} parent=1 // pred_check
      _
    $region19: #{tpu_custom_call.1} parent=1 // pred_check_branch
      %21 = sbr.rel (0) target = $region21
    $region20: #{tpu_custom_call.1} parent=1 // pred_region
      _
    $region21: #{tpu_custom_call.1} parent=1 // pred_fallthru
      _
    %v22 = vld [vmem:[%s0] sm:$0xff]
    %v23 = vld [vmem:[%s0 + $0x8] sm:$0xff]
    %v24 = vld [vmem:[%s1] sm:$0xff]
    %v25 = vld [vmem:[%s1 + $0x8] sm:$0xff]
    %v26 = vld [vmem:[%s1 + $0x10] sm:$0xff]
    %v27 = vld [vmem:[%s1 + $0x18] sm:$0xff]
    %v28 = vld [vmem:[%s1 + $0x20] sm:$0xf]
    %v29 = vld [vmem:[%s2] sm:$0x1]
    %v31 = vlaneseq
    %v32 = vshrl.u32 %v31, 7
    %v33 = vsub.s32 0, %v32
    %v34 = vrot.slane %v29, %v33
    %vm36 = vcmask 293888
    %v38 = vsel %vm36, %v22, 0
    %v41 = vsel %vm36, %v23, 0
    %vm43 = vcmask 1043456
    %v45 = vsel %vm43, %v28, 0
    %47 = vmatprep.subr.mxu0 0.0
    %48 = vmatpush1.msra.mxu0 %v24
    %49 = vmatprep.subr.mxu0 0.0
    %50 = vmatpush1.msra.mxu0 %v25
    %51 = vmatprep.subr.mxu0 0.0
    %52 = vmatpush1.msra.mxu0 %v26
    %53 = vmatprep.subr.mxu0 0.0
    %54 = vmatpush1.msra.mxu0 %v27
    %55 = vmatprep.subr.mxu0 0.0
    %56 = vmatpush1.msra.mxu0 %v45
    %57 = vmatprep.subr.mxu0 0.0
    %58 = vmatpush1.msra.mxu0 0.0
    %59 = vmatprep.subr.mxu0 0.0
    %60 = vmatpush1.msra.mxu0 0.0
    %61 = vmatprep.subr.mxu0 0.0
    %62 = vmatpush1.msra.mxu0 0.0
    %63 = vmatprep.subr.mxu0 0.0
    %64 = vmatpush1.msra.mxu0 0.0
    %65 = vmatprep.subr.mxu0 0.0
    %66 = vmatpush1.msra.mxu0 0.0
    %67 = vmatprep.subr.mxu0 0.0
    %68 = vmatpush1.msra.mxu0 0.0
    %69 = vmatprep.subr.mxu0 0.0
    %70 = vmatpush1.msra.mxu0 0.0
    %71 = vmatprep.subr.mxu0 0.0
    %72 = vmatpush1.msra.mxu0 0.0
    %73 = vmatprep.subr.mxu0 0.0
    %74 = vmatpush1.msra.mxu0 0.0
    %75 = vmatprep.subr.mxu0 0.0
    %76 = vmatpush1.msra.mxu0 0.0
    %77 = vmatprep.subr.mxu0 0.0
    %78 = vmatpush1.msra.mxu0 0.0
    %79 = vmatprep.subr.mxu0 0.0
    %80 = vmatpush1.msra.mxu0 0.0
    %81 = vmatprep.subr.mxu0 0.0
    %82 = vmatpush1.msra.mxu0 0.0
    %83 = vmatprep.subr.mxu0 0.0
    %84 = vmatpush1.msra.mxu0 0.0
    %85 = vmatprep.subr.mxu0 0.0
    %86 = vmatpush1.msra.mxu0 0.0
    %87 = vmatprep.subr.mxu0 0.0
    %88 = vmatpush1.msra.mxu0 0.0
    %89 = vmatprep.subr.mxu0 0.0
    %90 = vmatpush1.msra.mxu0 0.0
    %91 = vmatprep.subr.mxu0 0.0
    %92 = vmatpush1.msra.mxu0 0.0
    %93 = vmatprep.subr.mxu0 0.0
    %94 = vmatpush1.msra.mxu0 0.0
    %95 = vmatprep.subr.mxu0 0.0
    %96 = vmatpush1.msra.mxu0 0.0
    %97 = vmatprep.subr.mxu0 0.0
    %98 = vmatpush1.msra.mxu0 0.0
    %99 = vmatprep.subr.mxu0 0.0
    %100 = vmatpush1.msra.mxu0 0.0
    %101 = vmatprep.subr.mxu0 0.0
    %102 = vmatpush1.msra.mxu0 0.0
    %103 = vmatprep.subr.mxu0 0.0
    %104 = vmatpush1.msra.mxu0 0.0
    %105 = vmatprep.subr.mxu0 0.0
    %106 = vmatpush1.msra.mxu0 0.0
    %107 = vmatprep.subr.mxu0 0.0
    %108 = vmatpush1.msra.mxu0 0.0
    %109 = vmatprep.subr.mxu0 0.0
    %110 = vmatpush1.msra.mxu0 0.0
    %111 = vmatprep.mubr.f32.mxu0 0.0
    %112 = vmatmul.mubr.f32.gmra.mrb[0].mxu0 %v38
    %v113 = vpop.f32.mrb[0].mxu0
    %v114 = vadd.f32 %v34, %v113
    %v115 = vpop.f32.mrb[0].mxu0
    %116 = vmatprep.mubr.f32.mxu0 0.0
    %117 = vmatmul.mubr.f32.gmra.mrb[0].mxu0 %v41
    %v118 = vpop.f32.mrb[0].mxu0
    %v119 = vadd.f32 %v34, %v118
    %v120 = vpop.f32.mrb[0].mxu0
    %121 = vdwg.mxu0
    %v122 = vmax.f32 %v114, 0.0
    %v123 = vmax.f32 %v119, 0.0
    %v124 = vld [vmem:[%s3] sm:$0xff]
    %vm125 = vcmask 261120
    %v127 = vsel %vm125, %v124, 0
    %v130 = vsel %vm125, %v122, 0
    %v133 = vsel %vm125, %v123, 0
    %135 = vmatprep.subr.mxu0 0.0
    %136 = vmatpush1.xpose.msra.mxu0 %v130
    %137 = vmatprep.subr.mxu0 0.0
    %138 = vmatpush1.xpose.msra.mxu0 %v133
    %139 = vmatprep.subr.mxu0 0.0
    %140 = vmatpush1.xpose.msra.mxu0 0.0
    %141 = vmatprep.subr.mxu0 0.0
    %142 = vmatpush1.xpose.msra.mxu0 0.0
    %143 = vmatprep.subr.mxu0 0.0
    %144 = vmatpush1.xpose.msra.mxu0 0.0
    %145 = vmatprep.subr.mxu0 0.0
    %146 = vmatpush1.xpose.msra.mxu0 0.0
    %147 = vmatprep.subr.mxu0 0.0
    %148 = vmatpush1.xpose.msra.mxu0 0.0
    %149 = vmatprep.subr.mxu0 0.0
    %150 = vmatpush1.xpose.msra.mxu0 0.0
    %151 = vmatprep.subr.mxu0 0.0
    %152 = vmatpush1.xpose.msra.mxu0 0.0
    %153 = vmatprep.subr.mxu0 0.0
    %154 = vmatpush1.xpose.msra.mxu0 0.0
    %155 = vmatprep.subr.mxu0 0.0
    %156 = vmatpush1.xpose.msra.mxu0 0.0
    %157 = vmatprep.subr.mxu0 0.0
    %158 = vmatpush1.xpose.msra.mxu0 0.0
    %159 = vmatprep.subr.mxu0 0.0
    %160 = vmatpush1.xpose.msra.mxu0 0.0
    %161 = vmatprep.subr.mxu0 0.0
    %162 = vmatpush1.xpose.msra.mxu0 0.0
    %163 = vmatprep.subr.mxu0 0.0
    %164 = vmatpush1.xpose.msra.mxu0 0.0
    %165 = vmatprep.subr.mxu0 0.0
    %166 = vmatpush1.xpose.msra.mxu0 0.0
    %167 = vmatprep.subr.mxu0 0.0
    %168 = vmatpush1.xpose.msra.mxu0 0.0
    %169 = vmatprep.subr.mxu0 0.0
    %170 = vmatpush1.xpose.msra.mxu0 0.0
    %171 = vmatprep.subr.mxu0 0.0
    %172 = vmatpush1.xpose.msra.mxu0 0.0
    %173 = vmatprep.subr.mxu0 0.0
    %174 = vmatpush1.xpose.msra.mxu0 0.0
    %175 = vmatprep.subr.mxu0 0.0
    %176 = vmatpush1.xpose.msra.mxu0 0.0
    %177 = vmatprep.subr.mxu0 0.0
    %178 = vmatpush1.xpose.msra.mxu0 0.0
    %179 = vmatprep.subr.mxu0 0.0
    %180 = vmatpush1.xpose.msra.mxu0 0.0
    %181 = vmatprep.subr.mxu0 0.0
    %182 = vmatpush1.xpose.msra.mxu0 0.0
    %183 = vmatprep.subr.mxu0 0.0
    %184 = vmatpush1.xpose.msra.mxu0 0.0
    %185 = vmatprep.subr.mxu0 0.0
    %186 = vmatpush1.xpose.msra.mxu0 0.0
    %187 = vmatprep.subr.mxu0 0.0
    %188 = vmatpush1.xpose.msra.mxu0 0.0
    %189 = vmatprep.subr.mxu0 0.0
    %190 = vmatpush1.xpose.msra.mxu0 0.0
    %191 = vmatprep.subr.mxu0 0.0
    %192 = vmatpush1.xpose.msra.mxu0 0.0
    %193 = vmatprep.subr.mxu0 0.0
    %194 = vmatpush1.xpose.msra.mxu0 0.0
    %195 = vmatprep.subr.mxu0 0.0
    %196 = vmatpush1.xpose.msra.mxu0 0.0
    %197 = vmatprep.subr.mxu0 0.0
    %198 = vmatpush1.xpose.msra.mxu0 0.0
    %199 = vmatprep.mubr.f32.mxu0 0.0
    %200 = vmatmul.mubr.f32.gmra.mrb[0].mxu0 %v127
    %v201 = vpop.f32.mrb[0].mxu0
    %v202 = vadd.f32 0.0, %v201
    %v203 = vpop.f32.mrb[0].mxu0
    %204 = vdwg.mxu0
    %s205 = sld [smem:[#allocation2]]
    %v206 = vstv %s205
    %v207 = vadd.f32 %v202, %v206
    %v208 = vxor.u32 %v207, 2147483648
    %v209 = vmul.f32 %v208, 1.442695
    %v210 = vpow.pop %v209
    %v211 = vadd.f32 %v210, 1.0
    %v212 = vrcp.pop %v211
    %v213 = vmul.f32 1.0, %v212
    %vm214 = vcmask 122880
    %215 = vst.msk [vmem:[#allocation3] sm:$0x1] %vm214, %v213
    // Predicated region
    $region22: #{tpu_custom_call.1} parent=1 // pred_check
      _
    $region23: #{tpu_custom_call.1} parent=1 // pred_check_branch
      %217 = sbr.rel (0) target = $region25
    $region24: #{tpu_custom_call.1} parent=1 // pred_region
      %s219 = ssub.s32 16, 16
      %220 = vsyncadd [#allocation4], %s219
      %s222 = sshll.u32 [#allocation3], 4
      %s223 = int_to_ptr.vmem [resolvable:$true] %s222
      %225 = dma.vmem_to_hbm [thread:$0]  %s223, 16, %s5, [#allocation4]
    $region25: #{tpu_custom_call.1} parent=1 // pred_fallthru
      _
    // Predicated region
    $region26: #{tpu_custom_call.1} parent=1 // pred_check
      _
    $region27: #{tpu_custom_call.1} parent=1 // pred_check_branch
      %227 = sbr.rel (0) target = $region29
    $region28: #{tpu_custom_call.1} parent=1 // pred_region
      %228 = dma.done [#allocation4], 16
    $region29: #{tpu_custom_call.1} parent=1 // pred_fallthru
      _
    %229 = vsyncpa [#allocation4], 1

</llo_original>
